<compile_context>
chip_gen: v5e
topology: v5e:2x2
jax: 0.10.0
libtpu: 0.0.40
codegen_flags: <defaults>
</compile_context>

<pallas_src>
import functools

import jax
import jax.numpy as jnp
import numpy as np
from jax import lax
from jax.experimental import pallas as pl
from jax.experimental.pallas import tpu as pltpu

_LANE = 128
_SUBLANE = 8
_TM_TARGET = 512                      # review: 512-row tiles hit ~85% HBM roofline
_VMEM_BUDGET = 40 * 1024 * 1024       # conservative per-step working set (fits v7x)
_VMEM_LIMIT = 56 * 1024 * 1024        # scoped VMEM: < 64 MiB physical on v7x


def _round_up(x, m):
    return (x + m - 1) // m * m


# ----------------------------------------------------------------------------
# Pallas kernel: Gauss 3-matmul complex GEMM + hoisted bias combine.
# ----------------------------------------------------------------------------
def _complex_conv_kernel(pr_ref, pi_ref, wr_ref, wi_ref, ws_ref,
                         bre_ref, bim_ref, or_ref, oi_ref):
    pr = pr_ref[...]                 # (TM, K)  real patches
    pi = pi_ref[...]                 # (TM, K)  imag patches

    # 3 MXU dots instead of 4 (Gauss/Karatsuba).  The (pr + pi) add is VPU
    # work that hides under MXU slack.
    rr = jnp.dot(pr, wr_ref[...], preferred_element_type=jnp.float32)
    ii = jnp.dot(pi, wi_ref[...], preferred_element_type=jnp.float32)
    m = jnp.dot(pr + pi, ws_ref[...], preferred_element_type=jnp.float32)

    # real = conv_r(xr) - conv_i(xi) + (br - bi)
    # imag = conv_r(xi) + conv_i(xr) + (br + bi) = m - rr - ii + (br + bi)
    or_ref[...] = (rr - ii + bre_ref[...]).astype(or_ref.dtype)
    oi_ref[...] = (m - rr - ii + bim_ref[...]).astype(oi_ref.dtype)


# ----------------------------------------------------------------------------
# Glue: im2col in plain JAX, GEMMs in Pallas.
# ----------------------------------------------------------------------------
def _im2col(x, kernel_size, stride, padding, dilation):
    """x: (N, C, H, W) f32 -> (N*OH*OW, C*KH*KW) with columns ordered
    (cin, kh, kw), plus (OH, OW)."""
    N, C, H, W = x.shape
    KH = KW = kernel_size
    s, p, d = stride, padding, dilation
    OH = (H + 2 * p - d * (KH - 1) - 1) // s + 1
    OW = (W + 2 * p - d * (KW - 1) - 1) // s + 1

    xp = jnp.pad(x, ((0, 0), (0, 0), (p, p), (p, p)))
    cols = []
    for kh in range(KH):
        for kw in range(KW):
            sl = xp[:, :,
                    kh * d: kh * d + (OH - 1) * s + 1: s,
                    kw * d: kw * d + (OW - 1) * s + 1: s]   # (N, C, OH, OW)
            cols.append(sl)
    patches = jnp.stack(cols, axis=2)                        # (N, C, KH*KW, OH, OW)
    patches = patches.transpose(0, 3, 4, 1, 2).reshape(N * OH * OW, C * KH * KW)
    return patches, OH, OW


def _vmem_per_step(tm, k, cout_pad):
    """Rough per-grid-step VMEM footprint (bytes), incl. double buffering."""
    kp = _round_up(k, _LANE)
    patches = 2 * 2 * tm * kp * 4                 # pr, pi streams
    outs = 2 * 2 * tm * cout_pad * 4              # real, imag outputs
    weights = 3 * 2 * _round_up(k, _SUBLANE) * cout_pad * 4
    biases = 2 * 2 * _SUBLANE * cout_pad * 4
    return patches + outs + weights + biases


def _pick_tm(P, K, cout_pad):
    if P >= 2 * _TM_TARGET:
        tm = _TM_TARGET
    else:
        # Small problems: split into 2 grid steps (keeps both v7x TensorCores
        # busy) with minimal row padding.
        tm = max(_SUBLANE, _round_up((P + 1) // 2, _SUBLANE))
    while tm > _SUBLANE and _vmem_per_step(tm, K, cout_pad) > _VMEM_BUDGET:
        tm = max(_SUBLANE, _round_up(tm // 2, _SUBLANE))
    return tm


@functools.partial(jax.jit, static_argnames=("kernel_size", "stride",
                                             "padding", "dilation"))
def complex_conv2d(x, w_r, b_r, w_i, b_i, *, kernel_size=3, stride=1,
                   padding=0, dilation=1):
    """x: complex64 (N, Cin, H, W). Weights OIHW float32. Returns complex64
    (N, Cout, OH, OW), matching torch ComplexConv2d.forward."""
    N, Cin, H, W = x.shape
    Cout = w_r.shape[0]
    KH = KW = kernel_size
    K = Cin * KH * KW
    Cout_pad = _round_up(Cout, _LANE)

    xr = jnp.real(x).astype(jnp.float32)
    xi = jnp.imag(x).astype(jnp.float32)

    # TODO(synk): the im2col patch tensors are still materialized in HBM by XLA
    # (~KH*KW x input bytes per real/imag stream).  Fusing patch extraction
    # into the kernel (pl.ANY input + in-kernel shifted-slice accumulation) is
    # the remaining bandwidth lever, but requires layout-fragile in-kernel
    # reshapes / lane-offset scatters for small Cin, so it is left out here.
    pr, OH, OW = _im2col(xr, kernel_size, stride, padding, dilation)
    pi, _, _ = _im2col(xi, kernel_size, stride, padding, dilation)

    P = N * OH * OW
    TM = _pick_tm(P, K, Cout_pad)
    P_pad = _round_up(P, TM)
    pr = jnp.pad(pr, ((0, P_pad - P), (0, 0)))
    pi = jnp.pad(pi, ((0, P_pad - P), (0, 0)))

    # OIHW -> (K, Cout_pad) im2col layout (columns zero-padded to a 128
    # multiple so output stores are lane-dense, unmasked vst).
    def prep_w(w):
        w2 = w.reshape(Cout, K).T.astype(jnp.float32)
        return jnp.pad(w2, ((0, 0), (0, Cout_pad - Cout)))

    wr2 = prep_w(w_r)
    wi2 = prep_w(w_i)
    ws2 = wr2 + wi2                      # Gauss trick RHS, hoisted

    def prep_b(b):
        return jnp.pad(b.reshape(1, Cout).astype(jnp.float32),
                       ((0, 0), (0, Cout_pad - Cout)))

    bre = prep_b(b_r - b_i)              # hoisted bias combine (real part)
    bim = prep_b(b_r + b_i)              # hoisted bias combine (imag part)

    grid = (P_pad // TM,)
    out_r, out_i = pl.pallas_call(
        _complex_conv_kernel,
        out_shape=(jax.ShapeDtypeStruct((P_pad, Cout_pad), jnp.float32),
                   jax.ShapeDtypeStruct((P_pad, Cout_pad), jnp.float32)),
        grid=grid,
        in_specs=[
            pl.BlockSpec((TM, K), lambda i: (i, 0)),          # pr
            pl.BlockSpec((TM, K), lambda i: (i, 0)),          # pi
            pl.BlockSpec((K, Cout_pad), lambda i: (0, 0)),    # wr
            pl.BlockSpec((K, Cout_pad), lambda i: (0, 0)),    # wi
            pl.BlockSpec((K, Cout_pad), lambda i: (0, 0)),    # wr + wi
            pl.BlockSpec((1, Cout_pad), lambda i: (0, 0)),    # br - bi
            pl.BlockSpec((1, Cout_pad), lambda i: (0, 0)),    # br + bi
        ],
        out_specs=(pl.BlockSpec((TM, Cout_pad), lambda i: (i, 0)),
                   pl.BlockSpec((TM, Cout_pad), lambda i: (i, 0))),
        compiler_params=pltpu.CompilerParams(
            dimension_semantics=("parallel",),
            vmem_limit_bytes=_VMEM_LIMIT),
    )(pr, pi, wr2, wi2, ws2, bre, bim)

    # Slice away row/col padding, combine into complex FIRST, then a single
    # NHWC -> NCHW transpose (one HBM round-trip instead of two).
    out_r = out_r[:P, :Cout].reshape(N, OH, OW, Cout)
    out_i = out_i[:P, :Cout].reshape(N, OH, OW, Cout)
    return lax.complex(out_r, out_i).transpose(0, 3, 1, 2)


# ----------------------------------------------------------------------------
# Reference (pure JAX, XLA conv) for correctness check.
# ----------------------------------------------------------------------------
def _conv_ref(x, w, b, stride, padding, dilation):
    y = lax.conv_general_dilated(
        x, w, window_strides=(stride, stride),
        padding=[(padding, padding), (padding, padding)],
        rhs_dilation=(dilation, dilation),
        dimension_numbers=("NCHW", "OIHW", "NCHW"))
    return y + b[None, :, None, None]


def complex_conv2d_ref(x, w_r, b_r, w_i, b_i, stride=1, padding=0, dilation=1):
    xr = jnp.real(x).astype(jnp.float32)
    xi = jnp.imag(x).astype(jnp.float32)
    real = (_conv_ref(xr, w_r, b_r, stride, padding, dilation)
            - _conv_ref(xi, w_i, b_i, stride, padding, dilation))
    imag = (_conv_ref(xi, w_r, b_r, stride, padding, dilation)
            + _conv_ref(xr, w_i, b_i, stride, padding, dilation))
    return lax.complex(real, imag)


if __name__ == "__main__":
    # Small deterministic config: batch=2, Cin=4, Cout=8, spatial=16, k=3.
    N, Cin, Cout, H, W = 2, 4, 8, 16, 16
    kernel_size, stride, padding, dilation = 3, 1, 0, 1

    key = jax.random.PRNGKey(0)
    k_xr, k_xi, k_wr, k_br, k_wi, k_bi = jax.random.split(key, 6)

    x = lax.complex(
        jax.random.normal(k_xr, (N, Cin, H, W), dtype=jnp.float32),
        jax.random.normal(k_xi, (N, Cin, H, W), dtype=jnp.float32))

    # Deterministic Conv2d-style init (kaiming-uniform-ish bound).
    fan_in = Cin * kernel_size * kernel_size
    bound = 1.0 / np.sqrt(fan_in)
    w_r = jax.random.uniform(k_wr, (Cout, Cin, kernel_size, kernel_size),
                             jnp.float32, -bound, bound)
    b_r = jax.random.uniform(k_br, (Cout,), jnp.float32, -bound, bound)
    w_i = jax.random.uniform(k_wi, (Cout, Cin, kernel_size, kernel_size),
                             jnp.float32, -bound, bound)
    b_i = jax.random.uniform(k_bi, (Cout,), jnp.float32, -bound, bound)

    out = complex_conv2d(x, w_r, b_r, w_i, b_i, kernel_size=kernel_size,
                         stride=stride, padding=padding, dilation=dilation)
    out = jax.block_until_ready(out)

    ref = complex_conv2d_ref(x, w_r, b_r, w_i, b_i, stride, padding, dilation)
    ref = jax.block_until_ready(ref)

    assert out.shape == (N, Cout, H - kernel_size + 1, W - kernel_size + 1)
    assert out.dtype == jnp.complex64
    # Tolerance slightly loosened vs 1e-4: the Gauss 3-matmul rewrite changes
    # rounding (sanctioned by the perf review); genuine bugs would be O(1) off.
    np.testing.assert_allclose(np.asarray(jnp.real(out)),
                               np.asarray(jnp.real(ref)), rtol=5e-4, atol=5e-4)
    np.testing.assert_allclose(np.asarray(jnp.imag(out)),
                               np.asarray(jnp.imag(ref)), rtol=5e-4, atol=5e-4)

    print("KERNEL_OK")
</pallas_src>

<mosaic_0001>
module attributes {stable_mosaic.version = 11 : i64} {
  func.func @_complex_conv_kernel(%arg0: i32, %arg1: memref<200x36xf32, #tpu.memory_space<vmem>>, %arg2: memref<200x36xf32, #tpu.memory_space<vmem>>, %arg3: memref<36x128xf32, #tpu.memory_space<vmem>>, %arg4: memref<36x128xf32, #tpu.memory_space<vmem>>, %arg5: memref<36x128xf32, #tpu.memory_space<vmem>>, %arg6: memref<1x128xf32, #tpu.memory_space<vmem>>, %arg7: memref<1x128xf32, #tpu.memory_space<vmem>>, %arg8: memref<200x128xf32, #tpu.memory_space<vmem>>, %arg9: memref<200x128xf32, #tpu.memory_space<vmem>>) attributes {dimension_semantics = [#tpu.dimension_semantics<parallel>], iteration_bounds = array<i64: 2>, scalar_prefetch = 0 : i64, scratch_operands = 0 : i64, tpu.core_type = #tpu.core_type<tc>, window_params = [{transform_indices = @transform_0, window_bounds = array<i64: 200, 36>}, {transform_indices = @transform_1, window_bounds = array<i64: 200, 36>}, {pipeline_mode = #tpu.pipeline_mode<synchronous>, transform_indices = @transform_2, window_bounds = array<i64: 36, 128>}, {pipeline_mode = #tpu.pipeline_mode<synchronous>, transform_indices = @transform_3, window_bounds = array<i64: 36, 128>}, {pipeline_mode = #tpu.pipeline_mode<synchronous>, transform_indices = @transform_4, window_bounds = array<i64: 36, 128>}, {pipeline_mode = #tpu.pipeline_mode<synchronous>, transform_indices = @transform_5, window_bounds = array<i64: 1, 128>}, {pipeline_mode = #tpu.pipeline_mode<synchronous>, transform_indices = @transform_6, window_bounds = array<i64: 1, 128>}, {transform_indices = @transform_7, window_bounds = array<i64: 200, 128>}, {transform_indices = @transform_8, window_bounds = array<i64: 200, 128>}]} {
    %c0 = arith.constant 0 : index
    %c0_0 = arith.constant 0 : index
    %0 = vector.load %arg1[%c0, %c0_0] : memref<200x36xf32, #tpu.memory_space<vmem>>, vector<200x36xf32>
    %c0_1 = arith.constant 0 : index
    %c0_2 = arith.constant 0 : index
    %1 = vector.load %arg2[%c0_1, %c0_2] : memref<200x36xf32, #tpu.memory_space<vmem>>, vector<200x36xf32>
    %c0_3 = arith.constant 0 : index
    %c0_4 = arith.constant 0 : index
    %2 = vector.load %arg3[%c0_3, %c0_4] : memref<36x128xf32, #tpu.memory_space<vmem>>, vector<36x128xf32>
    %cst = arith.constant dense<0.000000e+00> : vector<200x128xf32>
    %3 = tpu.matmul %0, %2, %cst {dimension_numbers = #tpu.dot_dimension_numbers<[1], [0], [0], [1], [0, 0, 1, 1], [], []>} : vector<200x36xf32>, vector<36x128xf32>, vector<200x128xf32> -> vector<200x128xf32>
    %c0_5 = arith.constant 0 : index
    %c0_6 = arith.constant 0 : index
    %4 = vector.load %arg4[%c0_5, %c0_6] : memref<36x128xf32, #tpu.memory_space<vmem>>, vector<36x128xf32>
    %cst_7 = arith.constant dense<0.000000e+00> : vector<200x128xf32>
    %5 = tpu.matmul %1, %4, %cst_7 {dimension_numbers = #tpu.dot_dimension_numbers<[1], [0], [0], [1], [0, 0, 1, 1], [], []>} : vector<200x36xf32>, vector<36x128xf32>, vector<200x128xf32> -> vector<200x128xf32>
    %6 = arith.addf %0, %1 : vector<200x36xf32>
    %c0_8 = arith.constant 0 : index
    %c0_9 = arith.constant 0 : index
    %7 = vector.load %arg5[%c0_8, %c0_9] : memref<36x128xf32, #tpu.memory_space<vmem>>, vector<36x128xf32>
    %cst_10 = arith.constant dense<0.000000e+00> : vector<200x128xf32>
    %8 = tpu.matmul %6, %7, %cst_10 {dimension_numbers = #tpu.dot_dimension_numbers<[1], [0], [0], [1], [0, 0, 1, 1], [], []>} : vector<200x36xf32>, vector<36x128xf32>, vector<200x128xf32> -> vector<200x128xf32>
    %9 = arith.subf %3, %5 : vector<200x128xf32>
    %c0_11 = arith.constant 0 : index
    %c0_12 = arith.constant 0 : index
    %10 = vector.load %arg6[%c0_11, %c0_12] : memref<1x128xf32, #tpu.memory_space<vmem>>, vector<1x128xf32>
    %11 = vector.broadcast %10 : vector<1x128xf32> to vector<200x128xf32>
    %12 = arith.addf %9, %11 : vector<200x128xf32>
    %c0_13 = arith.constant 0 : index
    %c0_14 = arith.constant 0 : index
    %13 = vector.load %arg8[%c0_13, %c0_14] : memref<200x128xf32, #tpu.memory_space<vmem>>, vector<200x128xf32>
    tpu.vector_store %arg8[%c0_13, %c0_14], %12 {strides = array<i32>} : memref<200x128xf32, #tpu.memory_space<vmem>>, vector<200x128xf32>,
    %14 = arith.subf %8, %3 : vector<200x128xf32>
    %15 = arith.subf %14, %5 : vector<200x128xf32>
    %c0_15 = arith.constant 0 : index
    %c0_16 = arith.constant 0 : index
    %16 = vector.load %arg7[%c0_15, %c0_16] : memref<1x128xf32, #tpu.memory_space<vmem>>, vector<1x128xf32>
    %17 = vector.broadcast %16 : vector<1x128xf32> to vector<200x128xf32>
    %18 = arith.addf %15, %17 : vector<200x128xf32>
    %c0_17 = arith.constant 0 : index
    %c0_18 = arith.constant 0 : index
    %19 = vector.load %arg9[%c0_17, %c0_18] : memref<200x128xf32, #tpu.memory_space<vmem>>, vector<200x128xf32>
    tpu.vector_store %arg9[%c0_17, %c0_18], %18 {strides = array<i32>} : memref<200x128xf32, #tpu.memory_space<vmem>>, vector<200x128xf32>,
    return
  }
  func.func @transform_0(%arg0: i32) -> (i32, i32) {
    %c0_i32 = arith.constant 0 : i32
    %c0_i32_0 = arith.constant 0 : i32
    return %arg0, %c0_i32 : i32, i32
  }
  func.func @transform_1(%arg0: i32) -> (i32, i32) {
    %c0_i32 = arith.constant 0 : i32
    %c0_i32_0 = arith.constant 0 : i32
    return %arg0, %c0_i32 : i32, i32
  }
  func.func @transform_2(%arg0: i32) -> (i32, i32) {
    %c0_i32 = arith.constant 0 : i32
    %c0_i32_0 = arith.constant 0 : i32
    %c0_i32_1 = arith.constant 0 : i32
    return %c0_i32, %c0_i32_0 : i32, i32
  }
  func.func @transform_3(%arg0: i32) -> (i32, i32) {
    %c0_i32 = arith.constant 0 : i32
    %c0_i32_0 = arith.constant 0 : i32
    %c0_i32_1 = arith.constant 0 : i32
    return %c0_i32, %c0_i32_0 : i32, i32
  }
  func.func @transform_4(%arg0: i32) -> (i32, i32) {
    %c0_i32 = arith.constant 0 : i32
    %c0_i32_0 = arith.constant 0 : i32
    %c0_i32_1 = arith.constant 0 : i32
    return %c0_i32, %c0_i32_0 : i32, i32
  }
  func.func @transform_5(%arg0: i32) -> (i32, i32) {
    %c0_i32 = arith.constant 0 : i32
    %c0_i32_0 = arith.constant 0 : i32
    %c0_i32_1 = arith.constant 0 : i32
    return %c0_i32, %c0_i32_0 : i32, i32
  }
  func.func @transform_6(%arg0: i32) -> (i32, i32) {
    %c0_i32 = arith.constant 0 : i32
    %c0_i32_0 = arith.constant 0 : i32
    %c0_i32_1 = arith.constant 0 : i32
    return %c0_i32, %c0_i32_0 : i32, i32
  }
  func.func @transform_7(%arg0: i32) -> (i32, i32) {
    %c0_i32 = arith.constant 0 : i32
    %c0_i32_0 = arith.constant 0 : i32
    return %arg0, %c0_i32 : i32, i32
  }
  func.func @transform_8(%arg0: i32) -> (i32, i32) {
    %c0_i32 = arith.constant 0 : i32
    %c0_i32_0 = arith.constant 0 : i32
    return %arg0, %c0_i32 : i32, i32
  }
}

</mosaic_0001>

<llo_original>
// kernel: custom-call.1
$region0: #{custom-call.1}
  %s0 = inlined_call_operand.hbm [shape: c64[2,4,16,16], index: 0, kind: input, shape index: {}]
  %s1 = inlined_call_operand.vmem [shape: f32[2,4,16,16], index: 1, kind: output, shape index: {}]
  %s2 = scalar_lea.hbm %s0, 128
  $region1: #{custom-call.1} parent=0
    #allocation0 [shape = 's32[1]{0}', space=sflag, size = 0x4, scoped, tag = 'scoped memory for custom-call.1']
    %3 = vsyncpa [#allocation0], 0
    %s5 = sshll.u32 %s2, 4
    %s6 = int_to_ptr.hbm [resolvable:$true] %s5
    %s7 = sshll.u32 %s1, 4
    %s8 = int_to_ptr.vmem [resolvable:$true] %s7
    %10 = dma.hbm_to_vmem [thread:$0]  %s6, 2048, %s8, [#allocation0]
    %12 = dma.done [#allocation0], 2048
    %13 = vsyncpa [#allocation0], 1

// kernel: custom-call
$region0: #{custom-call}
  %s0 = inlined_call_operand.hbm [shape: c64[2,4,16,16], index: 0, kind: input, shape index: {}]
  %s1 = inlined_call_operand.vmem [shape: f32[2,4,16,16], index: 1, kind: output, shape index: {}]
  $region1: #{custom-call} parent=0
    #allocation0 [shape = 's32[1]{0}', space=sflag, size = 0x4, scoped, tag = 'scoped memory for custom-call']
    %2 = vsyncpa [#allocation0], 0
    %s4 = sshll.u32 %s0, 4
    %s5 = int_to_ptr.hbm [resolvable:$true] %s4
    %s6 = sshll.u32 %s1, 4
    %s7 = int_to_ptr.vmem [resolvable:$true] %s6
    %9 = dma.hbm_to_vmem [thread:$0]  %s5, 2048, %s7, [#allocation0]
    %11 = dma.done [#allocation0], 2048
    %12 = vsyncpa [#allocation0], 1

// kernel: custom-call.2
$region0: #{custom-call.2}
  %s0 = inlined_call_operand.vmem [shape: f32[2,8,14,14], index: 0, kind: input, shape index: {}]
  %s1 = inlined_call_operand.vmem [shape: f32[2,8,14,14], index: 1, kind: input, shape index: {}]
  %s2 = inlined_call_operand.vmem [shape: c64[2,8,14,14], index: 2, kind: output, shape index: {}]
  %s3 = scalar_lea.vmem %s2, 256
  %v4 = vld [vmem:[%s0] sm:$0xff]
  %5 = vst [vmem:[%s2] sm:$0xff] %v4
  %s6 = scalar_lea.vmem %s2, 8
  %s7 = scalar_lea.vmem %s0, 8
  %v8 = vld [vmem:[%s7] sm:$0xff]
  %9 = vst [vmem:[%s6] sm:$0xff] %v8
  %s10 = scalar_lea.vmem %s2, 16
  %s11 = scalar_lea.vmem %s0, 16
  %v12 = vld [vmem:[%s11] sm:$0xff]
  %13 = vst [vmem:[%s10] sm:$0xff] %v12
  %s14 = scalar_lea.vmem %s2, 24
  %s15 = scalar_lea.vmem %s0, 24
  %v16 = vld [vmem:[%s15] sm:$0xff]
  %17 = vst [vmem:[%s14] sm:$0xff] %v16
  %s18 = scalar_lea.vmem %s2, 32
  %s19 = scalar_lea.vmem %s0, 32
  %v20 = vld [vmem:[%s19] sm:$0xff]
  %21 = vst [vmem:[%s18] sm:$0xff] %v20
  %s22 = scalar_lea.vmem %s2, 40
  %s23 = scalar_lea.vmem %s0, 40
  %v24 = vld [vmem:[%s23] sm:$0xff]
  %25 = vst [vmem:[%s22] sm:$0xff] %v24
  %s26 = scalar_lea.vmem %s2, 48
  %s27 = scalar_lea.vmem %s0, 48
  %v28 = vld [vmem:[%s27] sm:$0xff]
  %29 = vst [vmem:[%s26] sm:$0xff] %v28
  %s30 = scalar_lea.vmem %s2, 56
  %s31 = scalar_lea.vmem %s0, 56
  %v32 = vld [vmem:[%s31] sm:$0xff]
  %33 = vst [vmem:[%s30] sm:$0xff] %v32
  %s34 = scalar_lea.vmem %s2, 64
  %s35 = scalar_lea.vmem %s0, 64
  %v36 = vld [vmem:[%s35] sm:$0xff]
  %37 = vst [vmem:[%s34] sm:$0xff] %v36
  %s38 = scalar_lea.vmem %s2, 72
  %s39 = scalar_lea.vmem %s0, 72
  %v40 = vld [vmem:[%s39] sm:$0xff]
  %41 = vst [vmem:[%s38] sm:$0xff] %v40
  %s42 = scalar_lea.vmem %s2, 80
  %s43 = scalar_lea.vmem %s0, 80
  %v44 = vld [vmem:[%s43] sm:$0xff]
  %45 = vst [vmem:[%s42] sm:$0xff] %v44
  %s46 = scalar_lea.vmem %s2, 88
  %s47 = scalar_lea.vmem %s0, 88
  %v48 = vld [vmem:[%s47] sm:$0xff]
  %49 = vst [vmem:[%s46] sm:$0xff] %v48
  %s50 = scalar_lea.vmem %s2, 96
  %s51 = scalar_lea.vmem %s0, 96
  %v52 = vld [vmem:[%s51] sm:$0xff]
  %53 = vst [vmem:[%s50] sm:$0xff] %v52
  %s54 = scalar_lea.vmem %s2, 104
  %s55 = scalar_lea.vmem %s0, 104
  %v56 = vld [vmem:[%s55] sm:$0xff]
  %57 = vst [vmem:[%s54] sm:$0xff] %v56
  %s58 = scalar_lea.vmem %s2, 112
  %s59 = scalar_lea.vmem %s0, 112
  %v60 = vld [vmem:[%s59] sm:$0xff]
  %61 = vst [vmem:[%s58] sm:$0xff] %v60
  %s62 = scalar_lea.vmem %s2, 120
  %s63 = scalar_lea.vmem %s0, 120
  %v64 = vld [vmem:[%s63] sm:$0xff]
  %65 = vst [vmem:[%s62] sm:$0xff] %v64
  %s66 = scalar_lea.vmem %s2, 128
  %s67 = scalar_lea.vmem %s0, 128
  %v68 = vld [vmem:[%s67] sm:$0xff]
  %69 = vst [vmem:[%s66] sm:$0xff] %v68
  %s70 = scalar_lea.vmem %s2, 136
  %s71 = scalar_lea.vmem %s0, 136
  %v72 = vld [vmem:[%s71] sm:$0xff]
  %73 = vst [vmem:[%s70] sm:$0xff] %v72
  %s74 = scalar_lea.vmem %s2, 144
  %s75 = scalar_lea.vmem %s0, 144
  %v76 = vld [vmem:[%s75] sm:$0xff]
  %77 = vst [vmem:[%s74] sm:$0xff] %v76
  %s78 = scalar_lea.vmem %s2, 152
  %s79 = scalar_lea.vmem %s0, 152
  %v80 = vld [vmem:[%s79] sm:$0xff]
  %81 = vst [vmem:[%s78] sm:$0xff] %v80
  %s82 = scalar_lea.vmem %s2, 160
  %s83 = scalar_lea.vmem %s0, 160
  %v84 = vld [vmem:[%s83] sm:$0xff]
  %85 = vst [vmem:[%s82] sm:$0xff] %v84
  %s86 = scalar_lea.vmem %s2, 168
  %s87 = scalar_lea.vmem %s0, 168
  %v88 = vld [vmem:[%s87] sm:$0xff]
  %89 = vst [vmem:[%s86] sm:$0xff] %v88
  %s90 = scalar_lea.vmem %s2, 176
  %s91 = scalar_lea.vmem %s0, 176
  %v92 = vld [vmem:[%s91] sm:$0xff]
  %93 = vst [vmem:[%s90] sm:$0xff] %v92
  %s94 = scalar_lea.vmem %s2, 184
  %s95 = scalar_lea.vmem %s0, 184
  %v96 = vld [vmem:[%s95] sm:$0xff]
  %97 = vst [vmem:[%s94] sm:$0xff] %v96
  %s98 = scalar_lea.vmem %s2, 192
  %s99 = scalar_lea.vmem %s0, 192
  %v100 = vld [vmem:[%s99] sm:$0xff]
  %101 = vst [vmem:[%s98] sm:$0xff] %v100
  %s102 = scalar_lea.vmem %s2, 200
  %s103 = scalar_lea.vmem %s0, 200
  %v104 = vld [vmem:[%s103] sm:$0xff]
  %105 = vst [vmem:[%s102] sm:$0xff] %v104
  %s106 = scalar_lea.vmem %s2, 208
  %s107 = scalar_lea.vmem %s0, 208
  %v108 = vld [vmem:[%s107] sm:$0xff]
  %109 = vst [vmem:[%s106] sm:$0xff] %v108
  %s110 = scalar_lea.vmem %s2, 216
  %s111 = scalar_lea.vmem %s0, 216
  %v112 = vld [vmem:[%s111] sm:$0xff]
  %113 = vst [vmem:[%s110] sm:$0xff] %v112
  %s114 = scalar_lea.vmem %s2, 224
  %s115 = scalar_lea.vmem %s0, 224
  %v116 = vld [vmem:[%s115] sm:$0xff]
  %117 = vst [vmem:[%s114] sm:$0xff] %v116
  %s118 = scalar_lea.vmem %s2, 232
  %s119 = scalar_lea.vmem %s0, 232
  %v120 = vld [vmem:[%s119] sm:$0xff]
  %121 = vst [vmem:[%s118] sm:$0xff] %v120
  %s122 = scalar_lea.vmem %s2, 240
  %s123 = scalar_lea.vmem %s0, 240
  %v124 = vld [vmem:[%s123] sm:$0xff]
  %125 = vst [vmem:[%s122] sm:$0xff] %v124
  %s126 = scalar_lea.vmem %s2, 248
  %s127 = scalar_lea.vmem %s0, 248
  %v128 = vld [vmem:[%s127] sm:$0xff]
  %129 = vst [vmem:[%s126] sm:$0xff] %v128
  %v130 = vld [vmem:[%s1] sm:$0xff]
  %131 = vst [vmem:[%s3] sm:$0xff] %v130
  %s132 = scalar_lea.vmem %s3, 8
  %s133 = scalar_lea.vmem %s1, 8
  %v134 = vld [vmem:[%s133] sm:$0xff]
  %135 = vst [vmem:[%s132] sm:$0xff] %v134
  %s136 = scalar_lea.vmem %s3, 16
  %s137 = scalar_lea.vmem %s1, 16
  %v138 = vld [vmem:[%s137] sm:$0xff]
  %139 = vst [vmem:[%s136] sm:$0xff] %v138
  %s140 = scalar_lea.vmem %s3, 24
  %s141 = scalar_lea.vmem %s1, 24
  %v142 = vld [vmem:[%s141] sm:$0xff]
  %143 = vst [vmem:[%s140] sm:$0xff] %v142
  %s144 = scalar_lea.vmem %s3, 32
  %s145 = scalar_lea.vmem %s1, 32
  %v146 = vld [vmem:[%s145] sm:$0xff]
  %147 = vst [vmem:[%s144] sm:$0xff] %v146
  %s148 = scalar_lea.vmem %s3, 40
  %s149 = scalar_lea.vmem %s1, 40
  %v150 = vld [vmem:[%s149] sm:$0xff]
  %151 = vst [vmem:[%s148] sm:$0xff] %v150
  %s152 = scalar_lea.vmem %s3, 48
  %s153 = scalar_lea.vmem %s1, 48
  %v154 = vld [vmem:[%s153] sm:$0xff]
  %155 = vst [vmem:[%s152] sm:$0xff] %v154
  %s156 = scalar_lea.vmem %s3, 56
  %s157 = scalar_lea.vmem %s1, 56
  %v158 = vld [vmem:[%s157] sm:$0xff]
  %159 = vst [vmem:[%s156] sm:$0xff] %v158
  %s160 = scalar_lea.vmem %s3, 64
  %s161 = scalar_lea.vmem %s1, 64
  %v162 = vld [vmem:[%s161] sm:$0xff]
  %163 = vst [vmem:[%s160] sm:$0xff] %v162
  %s164 = scalar_lea.vmem %s3, 72
  %s165 = scalar_lea.vmem %s1, 72
  %v166 = vld [vmem:[%s165] sm:$0xff]
  %167 = vst [vmem:[%s164] sm:$0xff] %v166
  %s168 = scalar_lea.vmem %s3, 80
  %s169 = scalar_lea.vmem %s1, 80
  %v170 = vld [vmem:[%s169] sm:$0xff]
  %171 = vst [vmem:[%s168] sm:$0xff] %v170
  %s172 = scalar_lea.vmem %s3, 88
  %s173 = scalar_lea.vmem %s1, 88
  %v174 = vld [vmem:[%s173] sm:$0xff]
  %175 = vst [vmem:[%s172] sm:$0xff] %v174
  %s176 = scalar_lea.vmem %s3, 96
  %s177 = scalar_lea.vmem %s1, 96
  %v178 = vld [vmem:[%s177] sm:$0xff]
  %179 = vst [vmem:[%s176] sm:$0xff] %v178
  %s180 = scalar_lea.vmem %s3, 104
  %s181 = scalar_lea.vmem %s1, 104
  %v182 = vld [vmem:[%s181] sm:$0xff]
  %183 = vst [vmem:[%s180] sm:$0xff] %v182
  %s184 = scalar_lea.vmem %s3, 112
  %s185 = scalar_lea.vmem %s1, 112
  %v186 = vld [vmem:[%s185] sm:$0xff]
  %187 = vst [vmem:[%s184] sm:$0xff] %v186
  %s188 = scalar_lea.vmem %s3, 120
  %s189 = scalar_lea.vmem %s1, 120
  %v190 = vld [vmem:[%s189] sm:$0xff]
  %191 = vst [vmem:[%s188] sm:$0xff] %v190
  %s192 = scalar_lea.vmem %s3, 128
  %s193 = scalar_lea.vmem %s1, 128
  %v194 = vld [vmem:[%s193] sm:$0xff]
  %195 = vst [vmem:[%s192] sm:$0xff] %v194
  %s196 = scalar_lea.vmem %s3, 136
  %s197 = scalar_lea.vmem %s1, 136
  %v198 = vld [vmem:[%s197] sm:$0xff]
  %199 = vst [vmem:[%s196] sm:$0xff] %v198
  %s200 = scalar_lea.vmem %s3, 144
  %s201 = scalar_lea.vmem %s1, 144
  %v202 = vld [vmem:[%s201] sm:$0xff]
  %203 = vst [vmem:[%s200] sm:$0xff] %v202
  %s204 = scalar_lea.vmem %s3, 152
  %s205 = scalar_lea.vmem %s1, 152
  %v206 = vld [vmem:[%s205] sm:$0xff]
  %207 = vst [vmem:[%s204] sm:$0xff] %v206
  %s208 = scalar_lea.vmem %s3, 160
  %s209 = scalar_lea.vmem %s1, 160
  %v210 = vld [vmem:[%s209] sm:$0xff]
  %211 = vst [vmem:[%s208] sm:$0xff] %v210
  %s212 = scalar_lea.vmem %s3, 168
  %s213 = scalar_lea.vmem %s1, 168
  %v214 = vld [vmem:[%s213] sm:$0xff]
  %215 = vst [vmem:[%s212] sm:$0xff] %v214
  %s216 = scalar_lea.vmem %s3, 176
  %s217 = scalar_lea.vmem %s1, 176
  %v218 = vld [vmem:[%s217] sm:$0xff]
  %219 = vst [vmem:[%s216] sm:$0xff] %v218
  %s220 = scalar_lea.vmem %s3, 184
  %s221 = scalar_lea.vmem %s1, 184
  %v222 = vld [vmem:[%s221] sm:$0xff]
  %223 = vst [vmem:[%s220] sm:$0xff] %v222
  %s224 = scalar_lea.vmem %s3, 192
  %s225 = scalar_lea.vmem %s1, 192
  %v226 = vld [vmem:[%s225] sm:$0xff]
  %227 = vst [vmem:[%s224] sm:$0xff] %v226
  %s228 = scalar_lea.vmem %s3, 200
  %s229 = scalar_lea.vmem %s1, 200
  %v230 = vld [vmem:[%s229] sm:$0xff]
  %231 = vst [vmem:[%s228] sm:$0xff] %v230
  %s232 = scalar_lea.vmem %s3, 208
  %s233 = scalar_lea.vmem %s1, 208
  %v234 = vld [vmem:[%s233] sm:$0xff]
  %235 = vst [vmem:[%s232] sm:$0xff] %v234
  %s236 = scalar_lea.vmem %s3, 216
  %s237 = scalar_lea.vmem %s1, 216
  %v238 = vld [vmem:[%s237] sm:$0xff]
  %239 = vst [vmem:[%s236] sm:$0xff] %v238
  %s240 = scalar_lea.vmem %s3, 224
  %s241 = scalar_lea.vmem %s1, 224
  %v242 = vld [vmem:[%s241] sm:$0xff]
  %243 = vst [vmem:[%s240] sm:$0xff] %v242
  %s244 = scalar_lea.vmem %s3, 232
  %s245 = scalar_lea.vmem %s1, 232
  %v246 = vld [vmem:[%s245] sm:$0xff]
  %247 = vst [vmem:[%s244] sm:$0xff] %v246
  %s248 = scalar_lea.vmem %s3, 240
  %s249 = scalar_lea.vmem %s1, 240
  %v250 = vld [vmem:[%s249] sm:$0xff]
  %251 = vst [vmem:[%s248] sm:$0xff] %v250
  %s252 = scalar_lea.vmem %s3, 248
  %s253 = scalar_lea.vmem %s1, 248
  %v254 = vld [vmem:[%s253] sm:$0xff]
  %255 = vst [vmem:[%s252] sm:$0xff] %v254

// kernel: complex_conv2d.1
$region0: #{complex_conv2d.1}
  #allocation0 [shape = 'u32[]', space=smem, size = 0x4, offset = 0x4, fixed_abs, tag = 'smem constant byte address 0x4 - core index']
  #allocation1 [shape = 'u32[72,128]{1,0:T(1,128)}', space=vmem, size = 0x9000, scoped, tag = 'internal scratch']
  %s0 = inlined_call_operand.vmem [shape: f32[400,36], index: 0, kind: input, shape index: {}]
  %s1 = inlined_call_operand.vmem [shape: f32[400,36], index: 1, kind: input, shape index: {}]
  %s2 = inlined_call_operand.vmem [shape: f32[36,128], index: 2, kind: input, shape index: {}]
  %s3 = inlined_call_operand.vmem [shape: f32[36,128], index: 3, kind: input, shape index: {}]
  %s4 = inlined_call_operand.vmem [shape: f32[36,128], index: 4, kind: input, shape index: {}]
  %s5 = inlined_call_operand.vmem [shape: f32[1,128], index: 5, kind: input, shape index: {}]
  %s6 = inlined_call_operand.vmem [shape: f32[1,128], index: 6, kind: input, shape index: {}]
  %s7 = inlined_call_operand.vmem [shape: f32[400,128], index: 7, kind: output, shape index: {0}]
  %s8 = inlined_call_operand.vmem [shape: f32[400,128], index: 8, kind: output, shape index: {1}]
  %9 = xla_tuple %s7, %s8
  %s10 = sld [smem:[#allocation0]]
  $region69: #{complex_conv2d.1} parent=0
    _
  %s12 = ssub.s32 1, %s10
  %s13 = scalar_select 0, %s12, %s10
  loop: start=0, step=1, limit=4
  $region2: #{complex_conv2d.1} parent=0 // loop_pre_header
    _
  $region3: #{complex_conv2d.1} parent=0 // loop_header
    %s15 = sphi 0, %s19
    %p16 = scmp.ge.s32.totalorder %s15, 4
    %s25 = sphi 0, %s27
    %s28 = sphi 0, %s25
    %s29 = sphi 0, %s28
    %s45 = sphi 0, %s29
    %s51 = sphi 0, %s53
    %s54 = sphi 0, %s51
    %s55 = sphi 0, %s54
    %s71 = sphi 0, %s55
    %s75 = sphi 0, %s75
    %s77 = sphi 0, %s75
    %s78 = sphi 0, %s77
    %s92 = sphi 0, %s78
    %s96 = sphi 0, %s96
    %s98 = sphi 0, %s96
    %s99 = sphi 0, %s98
    %s113 = sphi 0, %s99
    %s117 = sphi 0, %s117
    %s119 = sphi 0, %s117
    %s120 = sphi 0, %s119
    %s134 = sphi 0, %s120
    %s138 = sphi 0, %s138
    %s140 = sphi 0, %s138
    %s141 = sphi 0, %s140
    %s155 = sphi 0, %s141
    %s159 = sphi 0, %s159
    %s161 = sphi 0, %s159
    %s162 = sphi 0, %s161
    %s176 = sphi 0, %s162
    %s182 = sphi 0, %s184
    %s185 = sphi 0, %s182
    %s186 = sphi 0, %s185
    %s202 = sphi 0, %s186
    %s208 = sphi 0, %s210
    %s211 = sphi 0, %s208
    %s212 = sphi 0, %s211
    %s228 = sphi 0, %s212
  $region4: #{complex_conv2d.1} parent=0 // loop_header_branch
    %18 = sbr.rel (%p16) target = $region8
  $region5: #{complex_conv2d.1} parent=0 // loop_body
    %s20 = ssub.s32 %s15, 1
    %s21 = ssub.s32 %s15, 2
    %s22 = sadd.s32 %s15, 1
    %s23 = ssub.s32 %s15, %s22
    %p24 = scmp.eq.s32.totalorder %s23, 0
    %s26 = sadd.s32 %s25, 1
    %s27 = scalar_select %p24, %s25, %s26
    %p30 = pneg %p24
    %p31 = scmp.eq.s32.totalorder %s15, 1
    %p32 = por %p30, %p31
    %p33 = scmp.ne.s32.totalorder %s25, %s28
    %p34 = scmp.eq.s32.totalorder %s15, 0
    %p35 = por %p33, %p34
    %p36 = scmp.ne.s32.totalorder %s25, %s28
    %p37 = scmp.eq.s32.totalorder %s20, 1
    %p38 = por %p36, %p37
    %p39 = scmp.ne.s32.totalorder %s28, %s29
    %p40 = scmp.eq.s32.totalorder %s20, 0
    %p41 = por %p39, %p40
    %p42 = scmp.ne.s32.totalorder %s28, %s29
    %p43 = scmp.eq.s32.totalorder %s21, 1
    %p44 = por %p42, %p43
    %p46 = scmp.ne.s32.totalorder %s29, %s45
    %p47 = scmp.eq.s32.totalorder %s21, 0
    %p48 = por %p46, %p47
    %s49 = ssub.s32 %s15, %s22
    %p50 = scmp.eq.s32.totalorder %s49, 0
    %s52 = sadd.s32 %s51, 1
    %s53 = scalar_select %p50, %s51, %s52
    %p56 = pneg %p50
    %p57 = scmp.eq.s32.totalorder %s15, 1
    %p58 = por %p56, %p57
    %p59 = scmp.ne.s32.totalorder %s51, %s54
    %p60 = scmp.eq.s32.totalorder %s15, 0
    %p61 = por %p59, %p60
    %p62 = scmp.ne.s32.totalorder %s51, %s54
    %p63 = scmp.eq.s32.totalorder %s20, 1
    %p64 = por %p62, %p63
    %p65 = scmp.ne.s32.totalorder %s54, %s55
    %p66 = scmp.eq.s32.totalorder %s20, 0
    %p67 = por %p65, %p66
    %p68 = scmp.ne.s32.totalorder %s54, %s55
    %p69 = scmp.eq.s32.totalorder %s21, 1
    %p70 = por %p68, %p69
    %p72 = scmp.ne.s32.totalorder %s55, %s71
    %p73 = scmp.eq.s32.totalorder %s21, 0
    %p74 = por %p72, %p73
    %s76 = sadd.s32 %s75, 1
    %p79 = scmp.eq.s32.totalorder %s15, 1
    %p80 = scmp.ne.s32.totalorder %s75, %s77
    %p81 = scmp.eq.s32.totalorder %s15, 0
    %p82 = por %p80, %p81
    %p83 = scmp.ne.s32.totalorder %s75, %s77
    %p84 = scmp.eq.s32.totalorder %s20, 1
    %p85 = por %p83, %p84
    %p86 = scmp.ne.s32.totalorder %s77, %s78
    %p87 = scmp.eq.s32.totalorder %s20, 0
    %p88 = por %p86, %p87
    %p89 = scmp.ne.s32.totalorder %s77, %s78
    %p90 = scmp.eq.s32.totalorder %s21, 1
    %p91 = por %p89, %p90
    %p93 = scmp.ne.s32.totalorder %s78, %s92
    %p94 = scmp.eq.s32.totalorder %s21, 0
    %p95 = por %p93, %p94
    %s97 = sadd.s32 %s96, 1
    %p100 = scmp.eq.s32.totalorder %s15, 1
    %p101 = scmp.ne.s32.totalorder %s96, %s98
    %p102 = scmp.eq.s32.totalorder %s15, 0
    %p103 = por %p101, %p102
    %p104 = scmp.ne.s32.totalorder %s96, %s98
    %p105 = scmp.eq.s32.totalorder %s20, 1
    %p106 = por %p104, %p105
    %p107 = scmp.ne.s32.totalorder %s98, %s99
    %p108 = scmp.eq.s32.totalorder %s20, 0
    %p109 = por %p107, %p108
    %p110 = scmp.ne.s32.totalorder %s98, %s99
    %p111 = scmp.eq.s32.totalorder %s21, 1
    %p112 = por %p110, %p111
    %p114 = scmp.ne.s32.totalorder %s99, %s113
    %p115 = scmp.eq.s32.totalorder %s21, 0
    %p116 = por %p114, %p115
    %s118 = sadd.s32 %s117, 1
    %p121 = scmp.eq.s32.totalorder %s15, 1
    %p122 = scmp.ne.s32.totalorder %s117, %s119
    %p123 = scmp.eq.s32.totalorder %s15, 0
    %p124 = por %p122, %p123
    %p125 = scmp.ne.s32.totalorder %s117, %s119
    %p126 = scmp.eq.s32.totalorder %s20, 1
    %p127 = por %p125, %p126
    %p128 = scmp.ne.s32.totalorder %s119, %s120
    %p129 = scmp.eq.s32.totalorder %s20, 0
    %p130 = por %p128, %p129
    %p131 = scmp.ne.s32.totalorder %s119, %s120
    %p132 = scmp.eq.s32.totalorder %s21, 1
    %p133 = por %p131, %p132
    %p135 = scmp.ne.s32.totalorder %s120, %s134
    %p136 = scmp.eq.s32.totalorder %s21, 0
    %p137 = por %p135, %p136
    %s139 = sadd.s32 %s138, 1
    %p142 = scmp.eq.s32.totalorder %s15, 1
    %p143 = scmp.ne.s32.totalorder %s138, %s140
    %p144 = scmp.eq.s32.totalorder %s15, 0
    %p145 = por %p143, %p144
    %p146 = scmp.ne.s32.totalorder %s138, %s140
    %p147 = scmp.eq.s32.totalorder %s20, 1
    %p148 = por %p146, %p147
    %p149 = scmp.ne.s32.totalorder %s140, %s141
    %p150 = scmp.eq.s32.totalorder %s20, 0
    %p151 = por %p149, %p150
    %p152 = scmp.ne.s32.totalorder %s140, %s141
    %p153 = scmp.eq.s32.totalorder %s21, 1
    %p154 = por %p152, %p153
    %p156 = scmp.ne.s32.totalorder %s141, %s155
    %p157 = scmp.eq.s32.totalorder %s21, 0
    %p158 = por %p156, %p157
    %s160 = sadd.s32 %s159, 1
    %p163 = scmp.eq.s32.totalorder %s15, 1
    %p164 = scmp.ne.s32.totalorder %s159, %s161
    %p165 = scmp.eq.s32.totalorder %s15, 0
    %p166 = por %p164, %p165
    %p167 = scmp.ne.s32.totalorder %s159, %s161
    %p168 = scmp.eq.s32.totalorder %s20, 1
    %p169 = por %p167, %p168
    %p170 = scmp.ne.s32.totalorder %s161, %s162
    %p171 = scmp.eq.s32.totalorder %s20, 0
    %p172 = por %p170, %p171
    %p173 = scmp.ne.s32.totalorder %s161, %s162
    %p174 = scmp.eq.s32.totalorder %s21, 1
    %p175 = por %p173, %p174
    %p177 = scmp.ne.s32.totalorder %s162, %s176
    %p178 = scmp.eq.s32.totalorder %s21, 0
    %p179 = por %p177, %p178
    %s180 = ssub.s32 %s15, %s22
    %p181 = scmp.eq.s32.totalorder %s180, 0
    %s183 = sadd.s32 %s182, 1
    %s184 = scalar_select %p181, %s182, %s183
    %p187 = pneg %p181
    %p188 = scmp.eq.s32.totalorder %s15, 1
    %p189 = por %p187, %p188
    %p190 = scmp.ne.s32.totalorder %s182, %s185
    %p191 = scmp.eq.s32.totalorder %s15, 0
    %p192 = por %p190, %p191
    %p193 = scmp.ne.s32.totalorder %s182, %s185
    %p194 = scmp.eq.s32.totalorder %s20, 1
    %p195 = por %p193, %p194
    %p196 = scmp.ne.s32.totalorder %s185, %s186
    %p197 = scmp.eq.s32.totalorder %s20, 0
    %p198 = por %p196, %p197
    %p199 = scmp.ne.s32.totalorder %s185, %s186
    %p200 = scmp.eq.s32.totalorder %s21, 1
    %p201 = por %p199, %p200
    %p203 = scmp.ne.s32.totalorder %s186, %s202
    %p204 = scmp.eq.s32.totalorder %s21, 0
    %p205 = por %p203, %p204
    %s206 = ssub.s32 %s15, %s22
    %p207 = scmp.eq.s32.totalorder %s206, 0
    %s209 = sadd.s32 %s208, 1
    %s210 = scalar_select %p207, %s208, %s209
    %p213 = pneg %p207
    %p214 = scmp.eq.s32.totalorder %s15, 1
    %p215 = por %p213, %p214
    %p216 = scmp.ne.s32.totalorder %s208, %s211
    %p217 = scmp.eq.s32.totalorder %s15, 0
    %p218 = por %p216, %p217
    %p219 = scmp.ne.s32.totalorder %s208, %s211
    %p220 = scmp.eq.s32.totalorder %s20, 1
    %p221 = por %p219, %p220
    %p222 = scmp.ne.s32.totalorder %s211, %s212
    %p223 = scmp.eq.s32.totalorder %s20, 0
    %p224 = por %p222, %p223
    %p225 = scmp.ne.s32.totalorder %s211, %s212
    %p226 = scmp.eq.s32.totalorder %s21, 1
    %p227 = por %p225, %p226
    %p229 = scmp.ne.s32.totalorder %s212, %s228
    %p230 = scmp.eq.s32.totalorder %s21, 0
    %p231 = por %p229, %p230
    %p232 = scmp.le.s32.totalorder 1, %s15
    %p233 = scmp.lt.s32.totalorder %s15, 3
    %p234 = pnand %p232, %p233
    %p235 = pneg %p234
    // Predicated region
    $region9: #{complex_conv2d.1} parent=5 // pred_check
      _
    $region10: #{complex_conv2d.1} parent=5 // pred_check_branch
      %237 = sbr.rel (%p234) target = $region12
    $region11: #{complex_conv2d.1} parent=5 // pred_region
      %s238 = ssub.s32 %s15, 1
      // Predicated region
      $region13: #{complex_conv2d.1} parent=11 // pred_check
        %p239 = pneg %p88
      $region14: #{complex_conv2d.1} parent=11 // pred_check_branch
        %241 = sbr.rel (%p239) target = $region16
      $region15: #{complex_conv2d.1} parent=11 // pred_region
        _
      $region16: #{complex_conv2d.1} parent=11 // pred_fallthru
        _
      // Predicated region
      $region17: #{complex_conv2d.1} parent=11 // pred_check
        %p242 = pneg %p109
      $region18: #{complex_conv2d.1} parent=11 // pred_check_branch
        %244 = sbr.rel (%p242) target = $region20
      $region19: #{complex_conv2d.1} parent=11 // pred_region
        _
      $region20: #{complex_conv2d.1} parent=11 // pred_fallthru
        _
      // Predicated region
      $region21: #{complex_conv2d.1} parent=11 // pred_check
        %p245 = pneg %p130
      $region22: #{complex_conv2d.1} parent=11 // pred_check_branch
        %247 = sbr.rel (%p245) target = $region24
      $region23: #{complex_conv2d.1} parent=11 // pred_region
        _
      $region24: #{complex_conv2d.1} parent=11 // pred_fallthru
        _
      // Predicated region
      $region25: #{complex_conv2d.1} parent=11 // pred_check
        %p248 = pneg %p151
      $region26: #{complex_conv2d.1} parent=11 // pred_check_branch
        %250 = sbr.rel (%p248) target = $region28
      $region27: #{complex_conv2d.1} parent=11 // pred_region
        _
      $region28: #{complex_conv2d.1} parent=11 // pred_fallthru
        _
      // Predicated region
      $region29: #{complex_conv2d.1} parent=11 // pred_check
        %p251 = pneg %p172
      $region30: #{complex_conv2d.1} parent=11 // pred_check_branch
        %253 = sbr.rel (%p251) target = $region32
      $region31: #{complex_conv2d.1} parent=11 // pred_region
        _
      $region32: #{complex_conv2d.1} parent=11 // pred_fallthru
        _
    $region12: #{complex_conv2d.1} parent=5 // pred_fallthru
      _
    %p254 = scmp.lt.s32.totalorder %s15, 2
    // Predicated region
    $region33: #{complex_conv2d.1} parent=5 // pred_check
      %p255 = pneg %p254
    $region34: #{complex_conv2d.1} parent=5 // pred_check_branch
      %257 = sbr.rel (%p255) target = $region36
    $region35: #{complex_conv2d.1} parent=5 // pred_region
      // Predicated region
      $region37: #{complex_conv2d.1} parent=35 // pred_check
        %p258 = pneg %p35
      $region38: #{complex_conv2d.1} parent=35 // pred_check_branch
        %260 = sbr.rel (%p258) target = $region40
      $region39: #{complex_conv2d.1} parent=35 // pred_region
        %s261 = smul.u32 25, %s15
        %p262 = scmp.lt.s32.totalorder %s261, 49
        %s263 = scalar_select %p262, %s261, 49
        %s264 = smul.addr %s263, 8
        %s265 = scalar_lea.vmem %s0, %s264
        %s266 = smul.u32 25, %s15
      $region40: #{complex_conv2d.1} parent=35 // pred_fallthru
        _
      // Predicated region
      $region41: #{complex_conv2d.1} parent=35 // pred_check
        %p267 = pneg %p61
      $region42: #{complex_conv2d.1} parent=35 // pred_check_branch
        %269 = sbr.rel (%p267) target = $region44
      $region43: #{complex_conv2d.1} parent=35 // pred_region
        %s270 = smul.u32 25, %s15
        %p271 = scmp.lt.s32.totalorder %s270, 49
        %s272 = scalar_select %p271, %s270, 49
        %s273 = smul.addr %s272, 8
        %s274 = scalar_lea.vmem %s1, %s273
        %s275 = smul.u32 25, %s15
      $region44: #{complex_conv2d.1} parent=35 // pred_fallthru
        _
    $region36: #{complex_conv2d.1} parent=5 // pred_fallthru
      _
    %p276 = scmp.le.s32.totalorder 1, %s15
    %p277 = scmp.lt.s32.totalorder %s15, 3
    %p278 = pnand %p276, %p277
    %p279 = pneg %p278
    // Predicated region
    $region45: #{complex_conv2d.1} parent=5 // pred_check
      _
    $region46: #{complex_conv2d.1} parent=5 // pred_check_branch
      %281 = sbr.rel (%p278) target = $region48
    $region47: #{complex_conv2d.1} parent=5 // pred_region
      %s282 = ssub.s32 %s15, 1
      %s283 = smul.u32 25, %s20
      %p284 = scmp.lt.s32.totalorder %s283, 49
      %s285 = scalar_select %p284, %s283, 49
      %s286 = smul.addr %s285, 8
      %s287 = scalar_lea.vmem %s0, %s286
      %p288 = pneg %p41
      %p289 = pneg %p38
      %s290 = smul.u32 25, %s20
      %p291 = scmp.lt.s32.totalorder %s290, 49
      %s292 = scalar_select %p291, %s290, 49
      %s293 = smul.addr %s292, 8
      %s294 = scalar_lea.vmem %s1, %s293
      %p295 = pneg %p67
      %p296 = pneg %p64
      %p297 = pneg %p88
      %p298 = pneg %p85
      %p299 = pneg %p109
      %p300 = pneg %p106
      %p301 = pneg %p130
      %p302 = pneg %p127
      %p303 = pneg %p151
      %p304 = pneg %p148
      %p305 = pneg %p172
      %p306 = pneg %p169
      %p307 = pneg %p198
      %p308 = pneg %p195
      %s309 = smul.u32 25, %s20
      %p310 = scmp.lt.s32.totalorder %s309, 49
      %s311 = scalar_select %p310, %s309, 49
      %s312 = smul.addr %s311, 8
      %s313 = scalar_lea.vmem %s7, %s312
      %p314 = pneg %p224
      %p315 = pneg %p221
      %s316 = smul.u32 25, %s20
      %p317 = scmp.lt.s32.totalorder %s316, 49
      %s318 = scalar_select %p317, %s316, 49
      %s319 = smul.addr %s318, 8
      %s320 = scalar_lea.vmem %s8, %s319
      %s321 = smul.u32 25, %s20
      %p322 = scmp.lt.s32.totalorder %s321, 49
      %s323 = scalar_select %p322, %s321, 49
      %s324 = smul.addr %s323, 8
      %s325 = scalar_lea.vmem %s0, %s324
      %s326 = smul.u32 25, %s20
      %s327 = smul.u32 25, %s20
      %p328 = scmp.lt.s32.totalorder %s327, 49
      %s329 = scalar_select %p328, %s327, 49
      %s330 = smul.addr %s329, 8
      %s331 = scalar_lea.vmem %s1, %s330
      %s332 = smul.u32 25, %s20
      %s333 = smul.u32 25, %s20
      %p334 = scmp.lt.s32.totalorder %s333, 49
      %s335 = scalar_select %p334, %s333, 49
      %s336 = smul.addr %s335, 8
      %s337 = scalar_lea.vmem %s7, %s336
      %s338 = smul.u32 25, %s20
      %s339 = smul.u32 25, %s20
      %p340 = scmp.lt.s32.totalorder %s339, 49
      %s341 = scalar_select %p340, %s339, 49
      %s342 = smul.addr %s341, 8
      %s343 = scalar_lea.vmem %s8, %s342
      %s344 = smul.u32 25, %s20
      %v345 = vld [vmem:[%s325] sm:$0xff]
      %v346 = vld [vmem:[%s325 + $0x8] sm:$0xff]
      %v347 = vld [vmem:[%s325 + $0x10] sm:$0xff]
      %v348 = vld [vmem:[%s325 + $0x18] sm:$0xff]
      %v349 = vld [vmem:[%s325 + $0x20] sm:$0xff]
      %v350 = vld [vmem:[%s325 + $0x28] sm:$0xff]
      %v351 = vld [vmem:[%s325 + $0x30] sm:$0xff]
      %v352 = vld [vmem:[%s325 + $0x38] sm:$0xff]
      %v353 = vld [vmem:[%s325 + $0x40] sm:$0xff]
      %v354 = vld [vmem:[%s325 + $0x48] sm:$0xff]
      %v355 = vld [vmem:[%s325 + $0x50] sm:$0xff]
      %v356 = vld [vmem:[%s325 + $0x58] sm:$0xff]
      %v357 = vld [vmem:[%s325 + $0x60] sm:$0xff]
      %v358 = vld [vmem:[%s325 + $0x68] sm:$0xff]
      %v359 = vld [vmem:[%s325 + $0x70] sm:$0xff]
      %v360 = vld [vmem:[%s325 + $0x78] sm:$0xff]
      %v361 = vld [vmem:[%s325 + $0x80] sm:$0xff]
      %v362 = vld [vmem:[%s325 + $0x88] sm:$0xff]
      %v363 = vld [vmem:[%s325 + $0x90] sm:$0xff]
      %v364 = vld [vmem:[%s325 + $0x98] sm:$0xff]
      %v365 = vld [vmem:[%s325 + $0xa0] sm:$0xff]
      %v366 = vld [vmem:[%s325 + $0xa8] sm:$0xff]
      %v367 = vld [vmem:[%s325 + $0xb0] sm:$0xff]
      %v368 = vld [vmem:[%s325 + $0xb8] sm:$0xff]
      %v369 = vld [vmem:[%s325 + $0xc0] sm:$0xff]
      %v370 = vld [vmem:[%s331] sm:$0xff]
      %v371 = vld [vmem:[%s331 + $0x8] sm:$0xff]
      %v372 = vld [vmem:[%s331 + $0x10] sm:$0xff]
      %v373 = vld [vmem:[%s331 + $0x18] sm:$0xff]
      %v374 = vld [vmem:[%s331 + $0x20] sm:$0xff]
      %v375 = vld [vmem:[%s331 + $0x28] sm:$0xff]
      %v376 = vld [vmem:[%s331 + $0x30] sm:$0xff]
      %v377 = vld [vmem:[%s331 + $0x38] sm:$0xff]
      %v378 = vld [vmem:[%s331 + $0x40] sm:$0xff]
      %v379 = vld [vmem:[%s331 + $0x48] sm:$0xff]
      %v380 = vld [vmem:[%s331 + $0x50] sm:$0xff]
      %v381 = vld [vmem:[%s331 + $0x58] sm:$0xff]
      %v382 = vld [vmem:[%s331 + $0x60] sm:$0xff]
      %v383 = vld [vmem:[%s331 + $0x68] sm:$0xff]
      %v384 = vld [vmem:[%s331 + $0x70] sm:$0xff]
      %v385 = vld [vmem:[%s331 + $0x78] sm:$0xff]
      %v386 = vld [vmem:[%s331 + $0x80] sm:$0xff]
      %v387 = vld [vmem:[%s331 + $0x88] sm:$0xff]
      %v388 = vld [vmem:[%s331 + $0x90] sm:$0xff]
      %v389 = vld [vmem:[%s331 + $0x98] sm:$0xff]
      %v390 = vld [vmem:[%s331 + $0xa0] sm:$0xff]
      %v391 = vld [vmem:[%s331 + $0xa8] sm:$0xff]
      %v392 = vld [vmem:[%s331 + $0xb0] sm:$0xff]
      %v393 = vld [vmem:[%s331 + $0xb8] sm:$0xff]
      %v394 = vld [vmem:[%s331 + $0xc0] sm:$0xff]
      %v395 = vld [vmem:[%s2] sm:$0xff]
      %v396 = vld [vmem:[%s2 + $0x8] sm:$0xff]
      %v397 = vld [vmem:[%s2 + $0x10] sm:$0xff]
      %v398 = vld [vmem:[%s2 + $0x18] sm:$0xff]
      %v399 = vld [vmem:[%s2 + $0x20] sm:$0xf]
      %vm400 = vcmask 293888
      %v402 = vsel %vm400, %v345, 0
      %v405 = vsel %vm400, %v346, 0
      %v408 = vsel %vm400, %v347, 0
      %v411 = vsel %vm400, %v348, 0
      %v414 = vsel %vm400, %v349, 0
      %v417 = vsel %vm400, %v350, 0
      %v420 = vsel %vm400, %v351, 0
      %v423 = vsel %vm400, %v352, 0
      %v426 = vsel %vm400, %v353, 0
      %v429 = vsel %vm400, %v354, 0
      %v432 = vsel %vm400, %v355, 0
      %v435 = vsel %vm400, %v356, 0
      %v438 = vsel %vm400, %v357, 0
      %v441 = vsel %vm400, %v358, 0
      %v444 = vsel %vm400, %v359, 0
      %v447 = vsel %vm400, %v360, 0
      %v450 = vsel %vm400, %v361, 0
      %v453 = vsel %vm400, %v362, 0
      %v456 = vsel %vm400, %v363, 0
      %v459 = vsel %vm400, %v364, 0
      %v462 = vsel %vm400, %v365, 0
      %v465 = vsel %vm400, %v366, 0
      %v468 = vsel %vm400, %v367, 0
      %v471 = vsel %vm400, %v368, 0
      %v474 = vsel %vm400, %v369, 0
      %vm476 = vcmask 1043456
      %v478 = vsel %vm476, %v399, 0
      %480 = vmatpush.msra.mxu0 0.0
      %481 = vmatpush.msra.mxu0 0.0
      %482 = vmatpush.msra.mxu0 0.0
      %483 = vmatpush.msra.mxu0 0.0
      %484 = vmatpush.msra.mxu0 0.0
      %485 = vmatpush.msra.mxu0 0.0
      %486 = vmatpush.msra.mxu0 0.0
      %487 = vmatpush.msra.mxu0 0.0
      %488 = vmatpush.msra.mxu0 0.0
      %489 = vmatpush.msra.mxu0 0.0
      %490 = vmatpush.msra.mxu0 0.0
      %491 = vmatpush.msra.mxu0 %v478
      %492 = vmatpush.msra.mxu0 %v398
      %493 = vmatpush.msra.mxu0 %v397
      %494 = vmatpush.msra.mxu0 %v396
      %495 = vmatpush.msra.mxu0 %v395
      %496 = vmatmul.f32.gmra.mxu0 %v402
      %v497 = vpop.f32.mrf.mxu0
      %v498 = vadd.f32 0.0, %v497
      %499 = vmatmul.f32.gmra.mxu0 %v405
      %v500 = vpop.f32.mrf.mxu0
      %v501 = vadd.f32 0.0, %v500
      %502 = vmatmul.f32.gmra.mxu0 %v408
      %v503 = vpop.f32.mrf.mxu0
      %v504 = vadd.f32 0.0, %v503
      %505 = vmatmul.f32.gmra.mxu0 %v411
      %v506 = vpop.f32.mrf.mxu0
      %v507 = vadd.f32 0.0, %v506
      %508 = vmatmul.f32.gmra.mxu0 %v414
      %v509 = vpop.f32.mrf.mxu0
      %v510 = vadd.f32 0.0, %v509
      %511 = vmatmul.f32.gmra.mxu0 %v417
      %v512 = vpop.f32.mrf.mxu0
      %v513 = vadd.f32 0.0, %v512
      %514 = vmatmul.f32.gmra.mxu0 %v420
      %v515 = vpop.f32.mrf.mxu0
      %v516 = vadd.f32 0.0, %v515
      %517 = vmatmul.f32.gmra.mxu0 %v423
      %v518 = vpop.f32.mrf.mxu0
      %v519 = vadd.f32 0.0, %v518
      %520 = vmatmul.f32.gmra.mxu0 %v426
      %v521 = vpop.f32.mrf.mxu0
      %v522 = vadd.f32 0.0, %v521
      %523 = vmatmul.f32.gmra.mxu0 %v429
      %v524 = vpop.f32.mrf.mxu0
      %v525 = vadd.f32 0.0, %v524
      %526 = vmatmul.f32.gmra.mxu0 %v432
      %v527 = vpop.f32.mrf.mxu0
      %v528 = vadd.f32 0.0, %v527
      %529 = vmatmul.f32.gmra.mxu0 %v435
      %v530 = vpop.f32.mrf.mxu0
      %v531 = vadd.f32 0.0, %v530
      %532 = vmatmul.f32.gmra.mxu0 %v438
      %v533 = vpop.f32.mrf.mxu0
      %v534 = vadd.f32 0.0, %v533
      %535 = vmatmul.f32.gmra.mxu0 %v441
      %v536 = vpop.f32.mrf.mxu0
      %v537 = vadd.f32 0.0, %v536
      %538 = vmatmul.f32.gmra.mxu0 %v444
      %v539 = vpop.f32.mrf.mxu0
      %v540 = vadd.f32 0.0, %v539
      %541 = vmatmul.f32.gmra.mxu0 %v447
      %v542 = vpop.f32.mrf.mxu0
      %v543 = vadd.f32 0.0, %v542
      %544 = vmatmul.f32.gmra.mxu0 %v450
      %v545 = vpop.f32.mrf.mxu0
      %v546 = vadd.f32 0.0, %v545
      %547 = vmatmul.f32.gmra.mxu0 %v453
      %v548 = vpop.f32.mrf.mxu0
      %v549 = vadd.f32 0.0, %v548
      %550 = vmatmul.f32.gmra.mxu0 %v456
      %v551 = vpop.f32.mrf.mxu0
      %v552 = vadd.f32 0.0, %v551
      %553 = vmatmul.f32.gmra.mxu0 %v459
      %v554 = vpop.f32.mrf.mxu0
      %v555 = vadd.f32 0.0, %v554
      %556 = vmatmul.f32.gmra.mxu0 %v462
      %v557 = vpop.f32.mrf.mxu0
      %v558 = vadd.f32 0.0, %v557
      %559 = vmatmul.f32.gmra.mxu0 %v465
      %v560 = vpop.f32.mrf.mxu0
      %v561 = vadd.f32 0.0, %v560
      %562 = vmatmul.f32.gmra.mxu0 %v468
      %v563 = vpop.f32.mrf.mxu0
      %v564 = vadd.f32 0.0, %v563
      %565 = vmatmul.f32.gmra.mxu0 %v471
      %v566 = vpop.f32.mrf.mxu0
      %v567 = vadd.f32 0.0, %v566
      %568 = vmatmul.f32.gmra.mxu0 %v474
      %v569 = vpop.f32.mrf.mxu0
      %v570 = vadd.f32 0.0, %v569
      %571 = vdwg.mxu0
      %v572 = vld [vmem:[%s3] sm:$0xff]
      %v573 = vld [vmem:[%s3 + $0x8] sm:$0xff]
      %v574 = vld [vmem:[%s3 + $0x10] sm:$0xff]
      %v575 = vld [vmem:[%s3 + $0x18] sm:$0xff]
      %v576 = vld [vmem:[%s3 + $0x20] sm:$0xf]
      %v578 = vsel %vm400, %v370, 0
      %v581 = vsel %vm400, %v371, 0
      %v584 = vsel %vm400, %v372, 0
      %v587 = vsel %vm400, %v373, 0
      %v590 = vsel %vm400, %v374, 0
      %v593 = vsel %vm400, %v375, 0
      %v596 = vsel %vm400, %v376, 0
      %v599 = vsel %vm400, %v377, 0
      %v602 = vsel %vm400, %v378, 0
      %v605 = vsel %vm400, %v379, 0
      %v608 = vsel %vm400, %v380, 0
      %v611 = vsel %vm400, %v381, 0
      %v614 = vsel %vm400, %v382, 0
      %v617 = vsel %vm400, %v383, 0
      %v620 = vsel %vm400, %v384, 0
      %v623 = vsel %vm400, %v385, 0
      %v626 = vsel %vm400, %v386, 0
      %v629 = vsel %vm400, %v387, 0
      %v632 = vsel %vm400, %v388, 0
      %v635 = vsel %vm400, %v389, 0
      %v638 = vsel %vm400, %v390, 0
      %v641 = vsel %vm400, %v391, 0
      %v644 = vsel %vm400, %v392, 0
      %v647 = vsel %vm400, %v393, 0
      %v650 = vsel %vm400, %v394, 0
      %v653 = vsel %vm476, %v576, 0
      %655 = vmatpush.msra.mxu0 0.0
      %656 = vmatpush.msra.mxu0 0.0
      %657 = vmatpush.msra.mxu0 0.0
      %658 = vmatpush.msra.mxu0 0.0
      %659 = vmatpush.msra.mxu0 0.0
      %660 = vmatpush.msra.mxu0 0.0
      %661 = vmatpush.msra.mxu0 0.0
      %662 = vmatpush.msra.mxu0 0.0
      %663 = vmatpush.msra.mxu0 0.0
      %664 = vmatpush.msra.mxu0 0.0
      %665 = vmatpush.msra.mxu0 0.0
      %666 = vmatpush.msra.mxu0 %v653
      %667 = vmatpush.msra.mxu0 %v575
      %668 = vmatpush.msra.mxu0 %v574
      %669 = vmatpush.msra.mxu0 %v573
      %670 = vmatpush.msra.mxu0 %v572
      %671 = vmatmul.f32.gmra.mxu0 %v578
      %v672 = vpop.f32.mrf.mxu0
      %v673 = vadd.f32 0.0, %v672
      %674 = vmatmul.f32.gmra.mxu0 %v581
      %v675 = vpop.f32.mrf.mxu0
      %v676 = vadd.f32 0.0, %v675
      %677 = vmatmul.f32.gmra.mxu0 %v584
      %v678 = vpop.f32.mrf.mxu0
      %v679 = vadd.f32 0.0, %v678
      %680 = vmatmul.f32.gmra.mxu0 %v587
      %v681 = vpop.f32.mrf.mxu0
      %v682 = vadd.f32 0.0, %v681
      %683 = vmatmul.f32.gmra.mxu0 %v590
      %v684 = vpop.f32.mrf.mxu0
      %v685 = vadd.f32 0.0, %v684
      %686 = vmatmul.f32.gmra.mxu0 %v593
      %v687 = vpop.f32.mrf.mxu0
      %v688 = vadd.f32 0.0, %v687
      %689 = vmatmul.f32.gmra.mxu0 %v596
      %v690 = vpop.f32.mrf.mxu0
      %v691 = vadd.f32 0.0, %v690
      %692 = vmatmul.f32.gmra.mxu0 %v599
      %v693 = vpop.f32.mrf.mxu0
      %v694 = vadd.f32 0.0, %v693
      %695 = vmatmul.f32.gmra.mxu0 %v602
      %v696 = vpop.f32.mrf.mxu0
      %v697 = vadd.f32 0.0, %v696
      %698 = vmatmul.f32.gmra.mxu0 %v605
      %v699 = vpop.f32.mrf.mxu0
      %v700 = vadd.f32 0.0, %v699
      %701 = vmatmul.f32.gmra.mxu0 %v608
      %v702 = vpop.f32.mrf.mxu0
      %v703 = vadd.f32 0.0, %v702
      %704 = vmatmul.f32.gmra.mxu0 %v611
      %v705 = vpop.f32.mrf.mxu0
      %v706 = vadd.f32 0.0, %v705
      %707 = vmatmul.f32.gmra.mxu0 %v614
      %v708 = vpop.f32.mrf.mxu0
      %v709 = vadd.f32 0.0, %v708
      %710 = vmatmul.f32.gmra.mxu0 %v617
      %v711 = vpop.f32.mrf.mxu0
      %v712 = vadd.f32 0.0, %v711
      %713 = vmatmul.f32.gmra.mxu0 %v620
      %v714 = vpop.f32.mrf.mxu0
      %v715 = vadd.f32 0.0, %v714
      %716 = vmatmul.f32.gmra.mxu0 %v623
      %v717 = vpop.f32.mrf.mxu0
      %v718 = vadd.f32 0.0, %v717
      %719 = vmatmul.f32.gmra.mxu0 %v626
      %v720 = vpop.f32.mrf.mxu0
      %v721 = vadd.f32 0.0, %v720
      %722 = vmatmul.f32.gmra.mxu0 %v629
      %v723 = vpop.f32.mrf.mxu0
      %v724 = vadd.f32 0.0, %v723
      %725 = vmatmul.f32.gmra.mxu0 %v632
      %v726 = vpop.f32.mrf.mxu0
      %v727 = vadd.f32 0.0, %v726
      %728 = vmatmul.f32.gmra.mxu0 %v635
      %v729 = vpop.f32.mrf.mxu0
      %v730 = vadd.f32 0.0, %v729
      %731 = vmatmul.f32.gmra.mxu0 %v638
      %v732 = vpop.f32.mrf.mxu0
      %v733 = vadd.f32 0.0, %v732
      %734 = vmatmul.f32.gmra.mxu0 %v641
      %v735 = vpop.f32.mrf.mxu0
      %v736 = vadd.f32 0.0, %v735
      %737 = vmatmul.f32.gmra.mxu0 %v644
      %v738 = vpop.f32.mrf.mxu0
      %v739 = vadd.f32 0.0, %v738
      %740 = vmatmul.f32.gmra.mxu0 %v647
      %v741 = vpop.f32.mrf.mxu0
      %v742 = vadd.f32 0.0, %v741
      %743 = vmatmul.f32.gmra.mxu0 %v650
      %v744 = vpop.f32.mrf.mxu0
      %v745 = vadd.f32 0.0, %v744
      %746 = vdwg.mxu0
      %v747 = vadd.f32 %v345, %v370
      %v748 = vadd.f32 %v346, %v371
      %v749 = vadd.f32 %v347, %v372
      %v750 = vadd.f32 %v348, %v373
      %v751 = vadd.f32 %v349, %v374
      %v752 = vadd.f32 %v350, %v375
      %v753 = vadd.f32 %v351, %v376
      %v754 = vadd.f32 %v352, %v377
      %v755 = vadd.f32 %v353, %v378
      %v756 = vadd.f32 %v354, %v379
      %v757 = vadd.f32 %v355, %v380
      %v758 = vadd.f32 %v356, %v381
      %v759 = vadd.f32 %v357, %v382
      %v760 = vadd.f32 %v358, %v383
      %v761 = vadd.f32 %v359, %v384
      %v762 = vadd.f32 %v360, %v385
      %v763 = vadd.f32 %v361, %v386
      %v764 = vadd.f32 %v362, %v387
      %v765 = vadd.f32 %v363, %v388
      %v766 = vadd.f32 %v364, %v389
      %v767 = vadd.f32 %v365, %v390
      %v768 = vadd.f32 %v366, %v391
      %v769 = vadd.f32 %v367, %v392
      %v770 = vadd.f32 %v368, %v393
      %v771 = vadd.f32 %v369, %v394
      %v772 = vld [vmem:[%s4] sm:$0xff]
      %v773 = vld [vmem:[%s4 + $0x8] sm:$0xff]
      %v774 = vld [vmem:[%s4 + $0x10] sm:$0xff]
      %v775 = vld [vmem:[%s4 + $0x18] sm:$0xff]
      %v776 = vld [vmem:[%s4 + $0x20] sm:$0xf]
      %v778 = vsel %vm400, %v747, 0
      %v781 = vsel %vm400, %v748, 0
      %v784 = vsel %vm400, %v749, 0
      %v787 = vsel %vm400, %v750, 0
      %v790 = vsel %vm400, %v751, 0
      %v793 = vsel %vm400, %v752, 0
      %v796 = vsel %vm400, %v753, 0
      %v799 = vsel %vm400, %v754, 0
      %v802 = vsel %vm400, %v755, 0
      %v805 = vsel %vm400, %v756, 0
      %v808 = vsel %vm400, %v757, 0
      %v811 = vsel %vm400, %v758, 0
      %v814 = vsel %vm400, %v759, 0
      %v817 = vsel %vm400, %v760, 0
      %v820 = vsel %vm400, %v761, 0
      %v823 = vsel %vm400, %v762, 0
      %v826 = vsel %vm400, %v763, 0
      %v829 = vsel %vm400, %v764, 0
      %v832 = vsel %vm400, %v765, 0
      %v835 = vsel %vm400, %v766, 0
      %v838 = vsel %vm400, %v767, 0
      %v841 = vsel %vm400, %v768, 0
      %v844 = vsel %vm400, %v769, 0
      %v847 = vsel %vm400, %v770, 0
      %v850 = vsel %vm400, %v771, 0
      %v853 = vsel %vm476, %v776, 0
      %855 = vmatpush.msra.mxu0 0.0
      %856 = vmatpush.msra.mxu0 0.0
      %857 = vmatpush.msra.mxu0 0.0
      %858 = vmatpush.msra.mxu0 0.0
      %859 = vmatpush.msra.mxu0 0.0
      %860 = vmatpush.msra.mxu0 0.0
      %861 = vmatpush.msra.mxu0 0.0
      %862 = vmatpush.msra.mxu0 0.0
      %863 = vmatpush.msra.mxu0 0.0
      %864 = vmatpush.msra.mxu0 0.0
      %865 = vmatpush.msra.mxu0 0.0
      %866 = vmatpush.msra.mxu0 %v853
      %867 = vmatpush.msra.mxu0 %v775
      %868 = vmatpush.msra.mxu0 %v774
      %869 = vmatpush.msra.mxu0 %v773
      %870 = vmatpush.msra.mxu0 %v772
      %871 = vmatmul.f32.gmra.mxu0 %v778
      %v872 = vpop.f32.mrf.mxu0
      %v873 = vadd.f32 0.0, %v872
      %874 = vmatmul.f32.gmra.mxu0 %v781
      %v875 = vpop.f32.mrf.mxu0
      %v876 = vadd.f32 0.0, %v875
      %877 = vmatmul.f32.gmra.mxu0 %v784
      %v878 = vpop.f32.mrf.mxu0
      %v879 = vadd.f32 0.0, %v878
      %880 = vmatmul.f32.gmra.mxu0 %v787
      %v881 = vpop.f32.mrf.mxu0
      %v882 = vadd.f32 0.0, %v881
      %883 = vmatmul.f32.gmra.mxu0 %v790
      %v884 = vpop.f32.mrf.mxu0
      %v885 = vadd.f32 0.0, %v884
      %886 = vmatmul.f32.gmra.mxu0 %v793
      %v887 = vpop.f32.mrf.mxu0
      %v888 = vadd.f32 0.0, %v887
      %889 = vmatmul.f32.gmra.mxu0 %v796
      %v890 = vpop.f32.mrf.mxu0
      %v891 = vadd.f32 0.0, %v890
      %892 = vmatmul.f32.gmra.mxu0 %v799
      %v893 = vpop.f32.mrf.mxu0
      %v894 = vadd.f32 0.0, %v893
      %895 = vmatmul.f32.gmra.mxu0 %v802
      %v896 = vpop.f32.mrf.mxu0
      %v897 = vadd.f32 0.0, %v896
      %898 = vmatmul.f32.gmra.mxu0 %v805
      %v899 = vpop.f32.mrf.mxu0
      %v900 = vadd.f32 0.0, %v899
      %901 = vmatmul.f32.gmra.mxu0 %v808
      %v902 = vpop.f32.mrf.mxu0
      %v903 = vadd.f32 0.0, %v902
      %904 = vmatmul.f32.gmra.mxu0 %v811
      %v905 = vpop.f32.mrf.mxu0
      %v906 = vadd.f32 0.0, %v905
      %907 = vmatmul.f32.gmra.mxu0 %v814
      %v908 = vpop.f32.mrf.mxu0
      %v909 = vadd.f32 0.0, %v908
      %910 = vmatmul.f32.gmra.mxu0 %v817
      %v911 = vpop.f32.mrf.mxu0
      %v912 = vadd.f32 0.0, %v911
      %913 = vmatmul.f32.gmra.mxu0 %v820
      %v914 = vpop.f32.mrf.mxu0
      %v915 = vadd.f32 0.0, %v914
      %916 = vmatmul.f32.gmra.mxu0 %v823
      %v917 = vpop.f32.mrf.mxu0
      %v918 = vadd.f32 0.0, %v917
      %919 = vmatmul.f32.gmra.mxu0 %v826
      %v920 = vpop.f32.mrf.mxu0
      %v921 = vadd.f32 0.0, %v920
      %922 = vmatmul.f32.gmra.mxu0 %v829
      %v923 = vpop.f32.mrf.mxu0
      %v924 = vadd.f32 0.0, %v923
      %925 = vmatmul.f32.gmra.mxu0 %v832
      %v926 = vpop.f32.mrf.mxu0
      %v927 = vadd.f32 0.0, %v926
      %928 = vmatmul.f32.gmra.mxu0 %v835
      %v929 = vpop.f32.mrf.mxu0
      %v930 = vadd.f32 0.0, %v929
      %931 = vmatmul.f32.gmra.mxu0 %v838
      %v932 = vpop.f32.mrf.mxu0
      %v933 = vadd.f32 0.0, %v932
      %934 = vmatmul.f32.gmra.mxu0 %v841
      %v935 = vpop.f32.mrf.mxu0
      %v936 = vadd.f32 0.0, %v935
      %937 = vmatmul.f32.gmra.mxu0 %v844
      %v938 = vpop.f32.mrf.mxu0
      %v939 = vadd.f32 0.0, %v938
      %940 = vmatmul.f32.gmra.mxu0 %v847
      %v941 = vpop.f32.mrf.mxu0
      %v942 = vadd.f32 0.0, %v941
      %943 = vmatmul.f32.gmra.mxu0 %v850
      %v944 = vpop.f32.mrf.mxu0
      %v945 = vadd.f32 0.0, %v944
      %946 = vdwg.mxu0
      %v947 = vsub.f32 %v498, %v673
      %v948 = vsub.f32 %v501, %v676
      %v949 = vsub.f32 %v504, %v679
      %v950 = vsub.f32 %v507, %v682
      %v951 = vsub.f32 %v510, %v685
      %v952 = vsub.f32 %v513, %v688
      %v953 = vsub.f32 %v516, %v691
      %v954 = vsub.f32 %v519, %v694
      %v955 = vsub.f32 %v522, %v697
      %v956 = vsub.f32 %v525, %v700
      %v957 = vsub.f32 %v528, %v703
      %v958 = vsub.f32 %v531, %v706
      %v959 = vsub.f32 %v534, %v709
      %v960 = vsub.f32 %v537, %v712
      %v961 = vsub.f32 %v540, %v715
      %v962 = vsub.f32 %v543, %v718
      %v963 = vsub.f32 %v546, %v721
      %v964 = vsub.f32 %v549, %v724
      %v965 = vsub.f32 %v552, %v727
      %v966 = vsub.f32 %v555, %v730
      %v967 = vsub.f32 %v558, %v733
      %v968 = vsub.f32 %v561, %v736
      %v969 = vsub.f32 %v564, %v739
      %v970 = vsub.f32 %v567, %v742
      %v971 = vsub.f32 %v570, %v745
      %v972 = vld [vmem:[%s5] sm:$0x1]
      %v974 = vperm.slane %v972, 0
      %v976 = vadd.f32 %v947, %v974
      %v977 = vadd.f32 %v948, %v974
      %v978 = vadd.f32 %v949, %v974
      %v979 = vadd.f32 %v950, %v974
      %v980 = vadd.f32 %v951, %v974
      %v981 = vadd.f32 %v952, %v974
      %v982 = vadd.f32 %v953, %v974
      %v983 = vadd.f32 %v954, %v974
      %v984 = vadd.f32 %v955, %v974
      %v985 = vadd.f32 %v956, %v974
      %v986 = vadd.f32 %v957, %v974
      %v987 = vadd.f32 %v958, %v974
      %v988 = vadd.f32 %v959, %v974
      %v989 = vadd.f32 %v960, %v974
      %v990 = vadd.f32 %v961, %v974
      %v991 = vadd.f32 %v962, %v974
      %v992 = vadd.f32 %v963, %v974
      %v993 = vadd.f32 %v964, %v974
      %v994 = vadd.f32 %v965, %v974
      %v995 = vadd.f32 %v966, %v974
      %v996 = vadd.f32 %v967, %v974
      %v997 = vadd.f32 %v968, %v974
      %v998 = vadd.f32 %v969, %v974
      %v999 = vadd.f32 %v970, %v974
      %v1000 = vadd.f32 %v971, %v974
      %1001 = vst [vmem:[%s337] sm:$0xff] %v976
      %1002 = vst [vmem:[%s337 + $0x8] sm:$0xff] %v977
      %1003 = vst [vmem:[%s337 + $0x10] sm:$0xff] %v978
      %1004 = vst [vmem:[%s337 + $0x18] sm:$0xff] %v979
      %1005 = vst [vmem:[%s337 + $0x20] sm:$0xff] %v980
      %1006 = vst [vmem:[%s337 + $0x28] sm:$0xff] %v981
      %1007 = vst [vmem:[%s337 + $0x30] sm:$0xff] %v982
      %1008 = vst [vmem:[%s337 + $0x38] sm:$0xff] %v983
      %1009 = vst [vmem:[%s337 + $0x40] sm:$0xff] %v984
      %1010 = vst [vmem:[%s337 + $0x48] sm:$0xff] %v985
      %1011 = vst [vmem:[%s337 + $0x50] sm:$0xff] %v986
      %1012 = vst [vmem:[%s337 + $0x58] sm:$0xff] %v987
      %1013 = vst [vmem:[%s337 + $0x60] sm:$0xff] %v988
      %1014 = vst [vmem:[%s337 + $0x68] sm:$0xff] %v989
      %1015 = vst [vmem:[%s337 + $0x70] sm:$0xff] %v990
      %1016 = vst [vmem:[%s337 + $0x78] sm:$0xff] %v991
      %1017 = vst [vmem:[%s337 + $0x80] sm:$0xff] %v992
      %1018 = vst [vmem:[%s337 + $0x88] sm:$0xff] %v993
      %1019 = vst [vmem:[%s337 + $0x90] sm:$0xff] %v994
      %1020 = vst [vmem:[%s337 + $0x98] sm:$0xff] %v995
      %1021 = vst [vmem:[%s337 + $0xa0] sm:$0xff] %v996
      %1022 = vst [vmem:[%s337 + $0xa8] sm:$0xff] %v997
      %1023 = vst [vmem:[%s337 + $0xb0] sm:$0xff] %v998
      %1024 = vst [vmem:[%s337 + $0xb8] sm:$0xff] %v999
      %1025 = vst [vmem:[%s337 + $0xc0] sm:$0xff] %v1000
      %v1026 = vsub.f32 %v873, %v498
      %v1027 = vsub.f32 %v876, %v501
      %v1028 = vsub.f32 %v879, %v504
      %v1029 = vsub.f32 %v882, %v507
      %v1030 = vsub.f32 %v885, %v510
      %v1031 = vsub.f32 %v888, %v513
      %v1032 = vsub.f32 %v891, %v516
      %v1033 = vsub.f32 %v894, %v519
      %v1034 = vsub.f32 %v897, %v522
      %v1035 = vsub.f32 %v900, %v525
      %v1036 = vsub.f32 %v903, %v528
      %v1037 = vsub.f32 %v906, %v531
      %v1038 = vsub.f32 %v909, %v534
      %v1039 = vsub.f32 %v912, %v537
      %v1040 = vsub.f32 %v915, %v540
      %v1041 = vsub.f32 %v918, %v543
      %v1042 = vsub.f32 %v921, %v546
      %v1043 = vsub.f32 %v924, %v549
      %v1044 = vsub.f32 %v927, %v552
      %v1045 = vsub.f32 %v930, %v555
      %v1046 = vsub.f32 %v933, %v558
      %v1047 = vsub.f32 %v936, %v561
      %v1048 = vsub.f32 %v939, %v564
      %v1049 = vsub.f32 %v942, %v567
      %v1050 = vsub.f32 %v945, %v570
      %v1051 = vsub.f32 %v1026, %v673
      %v1052 = vsub.f32 %v1027, %v676
      %v1053 = vsub.f32 %v1028, %v679
      %v1054 = vsub.f32 %v1029, %v682
      %v1055 = vsub.f32 %v1030, %v685
      %v1056 = vsub.f32 %v1031, %v688
      %v1057 = vsub.f32 %v1032, %v691
      %v1058 = vsub.f32 %v1033, %v694
      %v1059 = vsub.f32 %v1034, %v697
      %v1060 = vsub.f32 %v1035, %v700
      %v1061 = vsub.f32 %v1036, %v703
      %v1062 = vsub.f32 %v1037, %v706
      %v1063 = vsub.f32 %v1038, %v709
      %v1064 = vsub.f32 %v1039, %v712
      %v1065 = vsub.f32 %v1040, %v715
      %v1066 = vsub.f32 %v1041, %v718
      %v1067 = vsub.f32 %v1042, %v721
      %v1068 = vsub.f32 %v1043, %v724
      %v1069 = vsub.f32 %v1044, %v727
      %v1070 = vsub.f32 %v1045, %v730
      %v1071 = vsub.f32 %v1046, %v733
      %v1072 = vsub.f32 %v1047, %v736
      %v1073 = vsub.f32 %v1048, %v739
      %v1074 = vsub.f32 %v1049, %v742
      %v1075 = vsub.f32 %v1050, %v745
      %v1076 = vld [vmem:[%s6] sm:$0x1]
      %v1078 = vperm.slane %v1076, 0
      %v1080 = vadd.f32 %v1051, %v1078
      %v1081 = vadd.f32 %v1052, %v1078
      %v1082 = vadd.f32 %v1053, %v1078
      %v1083 = vadd.f32 %v1054, %v1078
      %v1084 = vadd.f32 %v1055, %v1078
      %v1085 = vadd.f32 %v1056, %v1078
      %v1086 = vadd.f32 %v1057, %v1078
      %v1087 = vadd.f32 %v1058, %v1078
      %v1088 = vadd.f32 %v1059, %v1078
      %v1089 = vadd.f32 %v1060, %v1078
      %v1090 = vadd.f32 %v1061, %v1078
      %v1091 = vadd.f32 %v1062, %v1078
      %v1092 = vadd.f32 %v1063, %v1078
      %v1093 = vadd.f32 %v1064, %v1078
      %v1094 = vadd.f32 %v1065, %v1078
      %v1095 = vadd.f32 %v1066, %v1078
      %v1096 = vadd.f32 %v1067, %v1078
      %v1097 = vadd.f32 %v1068, %v1078
      %v1098 = vadd.f32 %v1069, %v1078
      %v1099 = vadd.f32 %v1070, %v1078
      %v1100 = vadd.f32 %v1071, %v1078
      %v1101 = vadd.f32 %v1072, %v1078
      %v1102 = vadd.f32 %v1073, %v1078
      %v1103 = vadd.f32 %v1074, %v1078
      %v1104 = vadd.f32 %v1075, %v1078
      %1105 = vst [vmem:[%s343] sm:$0xff] %v1080
      %1106 = vst [vmem:[%s343 + $0x8] sm:$0xff] %v1081
      %1107 = vst [vmem:[%s343 + $0x10] sm:$0xff] %v1082
      %1108 = vst [vmem:[%s343 + $0x18] sm:$0xff] %v1083
      %1109 = vst [vmem:[%s343 + $0x20] sm:$0xff] %v1084
      %1110 = vst [vmem:[%s343 + $0x28] sm:$0xff] %v1085
      %1111 = vst [vmem:[%s343 + $0x30] sm:$0xff] %v1086
      %1112 = vst [vmem:[%s343 + $0x38] sm:$0xff] %v1087
      %1113 = vst [vmem:[%s343 + $0x40] sm:$0xff] %v1088
      %1114 = vst [vmem:[%s343 + $0x48] sm:$0xff] %v1089
      %1115 = vst [vmem:[%s343 + $0x50] sm:$0xff] %v1090
      %1116 = vst [vmem:[%s343 + $0x58] sm:$0xff] %v1091
      %1117 = vst [vmem:[%s343 + $0x60] sm:$0xff] %v1092
      %1118 = vst [vmem:[%s343 + $0x68] sm:$0xff] %v1093
      %1119 = vst [vmem:[%s343 + $0x70] sm:$0xff] %v1094
      %1120 = vst [vmem:[%s343 + $0x78] sm:$0xff] %v1095
      %1121 = vst [vmem:[%s343 + $0x80] sm:$0xff] %v1096
      %1122 = vst [vmem:[%s343 + $0x88] sm:$0xff] %v1097
      %1123 = vst [vmem:[%s343 + $0x90] sm:$0xff] %v1098
      %1124 = vst [vmem:[%s343 + $0x98] sm:$0xff] %v1099
      %1125 = vst [vmem:[%s343 + $0xa0] sm:$0xff] %v1100
      %1126 = vst [vmem:[%s343 + $0xa8] sm:$0xff] %v1101
      %1127 = vst [vmem:[%s343 + $0xb0] sm:$0xff] %v1102
      %1128 = vst [vmem:[%s343 + $0xb8] sm:$0xff] %v1103
      %1129 = vst [vmem:[%s343 + $0xc0] sm:$0xff] %v1104
      %s1130 = smul.u32 25, %s20
      %p1131 = scmp.lt.s32.totalorder %s1130, 49
      %s1132 = scalar_select %p1131, %s1130, 49
      %s1133 = smul.addr %s1132, 8
      %s1134 = scalar_lea.vmem %s7, %s1133
      %s1135 = smul.u32 25, %s20
      %p1136 = scmp.lt.s32.totalorder %s1135, 49
      %s1137 = scalar_select %p1136, %s1135, 49
      %s1138 = smul.addr %s1137, 8
      %s1139 = scalar_lea.vmem %s8, %s1138
      // Predicated region
      $region49: #{complex_conv2d.1} parent=47 // pred_check
        %p1140 = pneg %p195
      $region50: #{complex_conv2d.1} parent=47 // pred_check_branch
        %1142 = sbr.rel (%p1140) target = $region52
      $region51: #{complex_conv2d.1} parent=47 // pred_region
        %s1143 = smul.u32 25, %s20
      $region52: #{complex_conv2d.1} parent=47 // pred_fallthru
        _
      // Predicated region
      $region53: #{complex_conv2d.1} parent=47 // pred_check
        %p1144 = pneg %p221
      $region54: #{complex_conv2d.1} parent=47 // pred_check_branch
        %1146 = sbr.rel (%p1144) target = $region56
      $region55: #{complex_conv2d.1} parent=47 // pred_region
        %s1147 = smul.u32 25, %s20
      $region56: #{complex_conv2d.1} parent=47 // pred_fallthru
        _
    $region48: #{complex_conv2d.1} parent=5 // pred_fallthru
      _
    %p1148 = scmp.le.s32.totalorder 2, %s15
    // Predicated region
    $region57: #{complex_conv2d.1} parent=5 // pred_check
      %p1149 = pneg %p1148
    $region58: #{complex_conv2d.1} parent=5 // pred_check_branch
      %1151 = sbr.rel (%p1149) target = $region60
    $region59: #{complex_conv2d.1} parent=5 // pred_region
      %s1152 = ssub.s32 %s15, 2
      // Predicated region
      $region61: #{complex_conv2d.1} parent=59 // pred_check
        %p1153 = pneg %p201
      $region62: #{complex_conv2d.1} parent=59 // pred_check_branch
        %1155 = sbr.rel (%p1153) target = $region64
      $region63: #{complex_conv2d.1} parent=59 // pred_region
        %s1156 = smul.u32 25, %s21
        %p1157 = scmp.lt.s32.totalorder %s1156, 49
        %s1158 = scalar_select %p1157, %s1156, 49
        %s1159 = smul.addr %s1158, 8
        %s1160 = scalar_lea.vmem %s7, %s1159
      $region64: #{complex_conv2d.1} parent=59 // pred_fallthru
        _
      // Predicated region
      $region65: #{complex_conv2d.1} parent=59 // pred_check
        %p1161 = pneg %p227
      $region66: #{complex_conv2d.1} parent=59 // pred_check_branch
        %1163 = sbr.rel (%p1161) target = $region68
      $region67: #{complex_conv2d.1} parent=59 // pred_region
        %s1164 = smul.u32 25, %s21
        %p1165 = scmp.lt.s32.totalorder %s1164, 49
        %s1166 = scalar_select %p1165, %s1164, 49
        %s1167 = smul.addr %s1166, 8
        %s1168 = scalar_lea.vmem %s8, %s1167
      $region68: #{complex_conv2d.1} parent=59 // pred_fallthru
        _
    $region60: #{complex_conv2d.1} parent=5 // pred_fallthru
      _
  $region6: #{complex_conv2d.1} parent=0 // loop_footer
    %s19 = sadd.s32 1, %s15
  $region7: #{complex_conv2d.1} parent=0 // loop_footer_branch
    %14 = sbr.rel target = $region3
  $region8: #{complex_conv2d.1} parent=0 // loop_exit
    _

</llo_original>
